<compile_context>
chip_gen: v5e
topology: v5e:2x2
jax: 0.10.0
libtpu: 0.0.40
codegen_flags: <defaults>
</compile_context>

<pallas_src>
import jax
import jax.numpy as jnp
from jax.experimental import pallas as pl
from jax.experimental.pallas import tpu as pltpu

LOSS_FUNC = "mse"       # model_args.loss_func
PRIOR_TYPE = "tv-fd"    # model_args.prior_type
REG_LAMBDA = 1.0

# Per-input block target. 2 MiB keeps 2 inputs x 2 pipeline buffers (= 8 MiB)
# plus elementwise temporaries comfortably inside the 32 MiB scoped-VMEM budget
# requested below (safe on v5e/v6e 128 MiB and v7x 64 MiB physical VMEM).
_TARGET_BLOCK_BYTES = 2 * 1024 * 1024
_VMEM_LIMIT_BYTES = 32 * 1024 * 1024


def _partial_sums_kernel(x_ref, y_ref, out_ref):
    """One grid step = one (TC, Hk, Wk) slab of (prediction, target).

    Writes this block's partial sums into its own lane-dense output row:
      out[i, 0] = sum (x - y)^2
      out[i, 1] = sum of |forward diff along the sublane (second-to-last) axis|
      out[i, 2] = sum of |forward diff along the lane (last) axis|
    No carried state -> the grid axis is fully parallel.
    """
    x = x_ref[...].astype(jnp.float32)   # (TC, Hk, Wk)
    y = y_ref[...].astype(jnp.float32)

    d = x - y
    sse = jnp.sum(d * d)

    # Forward differences via XLU roll + mask (no unaligned slice copies).
    x_up = pltpu.roll(x, shift=1, axis=1)          # x_up[:, h, :] == x[:, h-1, :] (wrap at h=0)
    sub_idx = jax.lax.broadcasted_iota(jnp.int32, x.shape, 1)
    tv_sub = jnp.sum(jnp.where(sub_idx > 0, jnp.abs(x - x_up), 0.0))

    x_left = pltpu.roll(x, shift=1, axis=2)        # x_left[:, :, w] == x[:, :, w-1] (wrap at w=0)
    lane_idx = jax.lax.broadcasted_iota(jnp.int32, x.shape, 2)
    tv_lane = jnp.sum(jnp.where(lane_idx > 0, jnp.abs(x - x_left), 0.0))

    lane = jax.lax.broadcasted_iota(jnp.int32, (1, 128), 1)
    row = jnp.where(lane == 0, sse,
          jnp.where(lane == 1, tv_sub,
          jnp.where(lane == 2, tv_lane, 0.0)))
    out_ref[...] = row


def _pick_block_slices(total_slices, slice_bytes):
    """Largest divisor of total_slices whose block stays under the VMEM target."""
    cap = max(1, min(total_slices, _TARGET_BLOCK_BYTES // max(slice_bytes, 1)))
    for tc in range(int(cap), 0, -1):
        if total_slices % tc == 0:
            return tc
    return 1


def combined_loss(out_images, target_images, reg_lambda=REG_LAMBDA):
    """combinedLoss.forward for loss_func='mse', prior_type='tv-fd'."""
    B, C, H, W = out_images.shape

    # Lane-density lever: W maps to the 128-wide lane axis, so for tall-narrow
    # images put the larger spatial dim last and swap the TV terms back below.
    transpose_hw = H > W
    if transpose_hw:
        xs = jnp.swapaxes(out_images, 2, 3)
        ys = jnp.swapaxes(target_images, 2, 3)
        Hk, Wk = W, H
    else:
        xs, ys = out_images, target_images
        Hk, Wk = H, W

    n_slices = B * C
    xf = xs.reshape(n_slices, Hk, Wk)
    yf = ys.reshape(n_slices, Hk, Wk)

    itemsize = jnp.dtype(xf.dtype).itemsize
    tc = _pick_block_slices(n_slices, Hk * Wk * itemsize)
    num_blocks = n_slices // tc

    n_elems = B * C * H * W
    cost = pl.CostEstimate(flops=10 * n_elems, transcendentals=0,
                           bytes_accessed=2 * n_elems * itemsize)

    partials = pl.pallas_call(
        _partial_sums_kernel,
        out_shape=jax.ShapeDtypeStruct((num_blocks, 128), jnp.float32),
        grid_spec=pltpu.PrefetchScalarGridSpec(
            num_scalar_prefetch=0,
            grid=(num_blocks,),
            in_specs=[
                pl.BlockSpec((tc, Hk, Wk), lambda i: (i, 0, 0)),
                pl.BlockSpec((tc, Hk, Wk), lambda i: (i, 0, 0)),
            ],
            out_specs=pl.BlockSpec((1, 128), lambda i: (i, 0)),
        ),
        compiler_params=pltpu.CompilerParams(
            dimension_semantics=("parallel",),
            vmem_limit_bytes=_VMEM_LIMIT_BYTES),
        cost_estimate=cost,
    )(xf, yf)

    sums = jnp.sum(partials, axis=0)     # tiny (128,) cross-block reduce in plain JAX
    sse = sums[0]
    if transpose_hw:
        h_tv, w_tv = sums[2], sums[1]
    else:
        h_tv, w_tv = sums[1], sums[2]

    # likelihood term: nn.MSELoss() == mean over all elements
    mse = sse / jnp.float32(B * C * H * W)

    # prior term: tv-fd (H==1 or W==1 divides by zero, identical to the torch module)
    count_h = C * (H - 1) * W
    count_w = C * H * (W - 1)
    prior = (reg_lambda * 2.0
             * (0.5 * h_tv / count_h + 0.5 * w_tv / count_w) / B)

    return mse + prior


def _reference_loss(x, y, reg_lambda=REG_LAMBDA):
    # pure-JAX re-statement of the PyTorch forward (mse + tv-fd)
    B, C, H, W = x.shape
    mse = jnp.mean((x - y) ** 2)
    h_tv = jnp.sum(jnp.abs(x[:, :, 1:, :] - x[:, :, :-1, :]))
    w_tv = jnp.sum(jnp.abs(x[:, :, :, 1:] - x[:, :, :, :-1]))
    count_h = C * (H - 1) * W
    count_w = C * H * (W - 1)
    prior = reg_lambda * 2.0 * (0.5 * h_tv / count_h + 0.5 * w_tv / count_w) / B
    return mse + prior


if __name__ == "__main__":
    key = jax.random.PRNGKey(0)
    k1, k2 = jax.random.split(key)
    out_images = jax.random.normal(k1, (2, 4, 16, 16), dtype=jnp.float32)
    target_images = jax.random.normal(k2, (2, 4, 16, 16), dtype=jnp.float32)

    loss_fn = jax.jit(combined_loss)
    loss = loss_fn(out_images, target_images)
    loss = jax.block_until_ready(loss)

    ref = _reference_loss(out_images, target_images)
    assert jnp.allclose(loss, ref, rtol=1e-5, atol=1e-5), (loss, ref)

    print("KERNEL_OK")
</pallas_src>

<mosaic_0001>
module attributes {stable_mosaic.version = 11 : i64} {
  func.func @_partial_sums_kernel(%arg0: i32, %arg1: memref<8x16x16xf32, #tpu.memory_space<vmem>>, %arg2: memref<8x16x16xf32, #tpu.memory_space<vmem>>, %arg3: memref<1x128xf32, #tpu.memory_space<vmem>>) attributes {dimension_semantics = [#tpu.dimension_semantics<parallel>], iteration_bounds = array<i64: 1>, scalar_prefetch = 0 : i64, scratch_operands = 0 : i64, tpu.core_type = #tpu.core_type<tc>, window_params = [{transform_indices = @transform_0, window_bounds = array<i64: 8, 16, 16>}, {transform_indices = @transform_1, window_bounds = array<i64: 8, 16, 16>}, {transform_indices = @transform_2, window_bounds = array<i64: 1, 128>}]} {
    %c0 = arith.constant 0 : index
    %c0_0 = arith.constant 0 : index
    %c0_1 = arith.constant 0 : index
    %0 = vector.load %arg1[%c0, %c0_0, %c0_1] : memref<8x16x16xf32, #tpu.memory_space<vmem>>, vector<8x16x16xf32>
    %c0_2 = arith.constant 0 : index
    %c0_3 = arith.constant 0 : index
    %c0_4 = arith.constant 0 : index
    %1 = vector.load %arg2[%c0_2, %c0_3, %c0_4] : memref<8x16x16xf32, #tpu.memory_space<vmem>>, vector<8x16x16xf32>
    %2 = arith.subf %0, %1 : vector<8x16x16xf32>
    %3 = arith.mulf %2, %2 : vector<8x16x16xf32>
    %4 = vector.shape_cast %3 : vector<8x16x16xf32> to vector<1x8x16x16xf32>
    %cst = arith.constant dense<0.000000e+00> : vector<1xf32>
    %5 = vector.multi_reduction <add>, %4, %cst [1, 2, 3] : vector<1x8x16x16xf32> to vector<1xf32>
    %6 = vector.shape_cast %5 : vector<1xf32> to vector<1x1x1x1xf32>
    %7 = vector.extract %6[0, 0, 0, 0] : f32 from vector<1x1x1x1xf32>
    %c1_i32 = arith.constant 1 : i32
    %8 = tpu.dynamic_rotate %0 by %c1_i32 dim 1 : vector<8x16x16xf32>, i32 -> vector<8x16x16xf32>
    %9 = tpu.iota {dimensions = array<i32: 1>} : vector<8x16x16xi32>
    %c0_i32 = arith.constant 0 : i32
    %10 = vector.broadcast %c0_i32 : i32 to vector<8x16x16xi32>
    %11 = arith.cmpi sgt, %9, %10 : vector<8x16x16xi32>
    %12 = arith.subf %0, %8 : vector<8x16x16xf32>
    %13 = math.absf %12 : vector<8x16x16xf32>
    %cst_5 = arith.constant 0.000000e+00 : f32
    %14 = vector.broadcast %cst_5 : f32 to vector<8x16x16xf32>
    %15 = arith.select %11, %13, %14 : vector<8x16x16xi1>, vector<8x16x16xf32>
    %16 = vector.shape_cast %15 : vector<8x16x16xf32> to vector<1x8x16x16xf32>
    %cst_6 = arith.constant dense<0.000000e+00> : vector<1xf32>
    %17 = vector.multi_reduction <add>, %16, %cst_6 [1, 2, 3] : vector<1x8x16x16xf32> to vector<1xf32>
    %18 = vector.shape_cast %17 : vector<1xf32> to vector<1x1x1x1xf32>
    %19 = vector.extract %18[0, 0, 0, 0] : f32 from vector<1x1x1x1xf32>
    %c1_i32_7 = arith.constant 1 : i32
    %20 = tpu.dynamic_rotate %0 by %c1_i32_7 dim 2 : vector<8x16x16xf32>, i32 -> vector<8x16x16xf32>
    %21 = tpu.iota {dimensions = array<i32: 2>} : vector<8x16x16xi32>
    %c0_i32_8 = arith.constant 0 : i32
    %22 = vector.broadcast %c0_i32_8 : i32 to vector<8x16x16xi32>
    %23 = arith.cmpi sgt, %21, %22 : vector<8x16x16xi32>
    %24 = arith.subf %0, %20 : vector<8x16x16xf32>
    %25 = math.absf %24 : vector<8x16x16xf32>
    %cst_9 = arith.constant 0.000000e+00 : f32
    %26 = vector.broadcast %cst_9 : f32 to vector<8x16x16xf32>
    %27 = arith.select %23, %25, %26 : vector<8x16x16xi1>, vector<8x16x16xf32>
    %28 = vector.shape_cast %27 : vector<8x16x16xf32> to vector<1x8x16x16xf32>
    %cst_10 = arith.constant dense<0.000000e+00> : vector<1xf32>
    %29 = vector.multi_reduction <add>, %28, %cst_10 [1, 2, 3] : vector<1x8x16x16xf32> to vector<1xf32>
    %30 = vector.shape_cast %29 : vector<1xf32> to vector<1x1x1x1xf32>
    %31 = vector.extract %30[0, 0, 0, 0] : f32 from vector<1x1x1x1xf32>
    %32 = tpu.iota {dimensions = array<i32: 1>} : vector<1x128xi32>
    %c0_i32_11 = arith.constant 0 : i32
    %33 = vector.broadcast %c0_i32_11 : i32 to vector<1x128xi32>
    %34 = arith.cmpi eq, %32, %33 : vector<1x128xi32>
    %c1_i32_12 = arith.constant 1 : i32
    %35 = vector.broadcast %c1_i32_12 : i32 to vector<1x128xi32>
    %36 = arith.cmpi eq, %32, %35 : vector<1x128xi32>
    %c2_i32 = arith.constant 2 : i32
    %37 = vector.broadcast %c2_i32 : i32 to vector<1x128xi32>
    %38 = arith.cmpi eq, %32, %37 : vector<1x128xi32>
    %cst_13 = arith.constant 0.000000e+00 : f32
    %39 = vector.broadcast %31 : f32 to vector<1x128xf32>
    %40 = vector.broadcast %cst_13 : f32 to vector<1x128xf32>
    %41 = arith.select %38, %39, %40 : vector<1x128xi1>, vector<1x128xf32>
    %42 = vector.broadcast %19 : f32 to vector<1x128xf32>
    %43 = arith.select %36, %42, %41 : vector<1x128xi1>, vector<1x128xf32>
    %44 = vector.broadcast %7 : f32 to vector<1x128xf32>
    %45 = arith.select %34, %44, %43 : vector<1x128xi1>, vector<1x128xf32>
    %c0_14 = arith.constant 0 : index
    %c0_15 = arith.constant 0 : index
    %46 = vector.load %arg3[%c0_14, %c0_15] : memref<1x128xf32, #tpu.memory_space<vmem>>, vector<1x128xf32>
    tpu.vector_store %arg3[%c0_14, %c0_15], %45 {strides = array<i32>} : memref<1x128xf32, #tpu.memory_space<vmem>>, vector<1x128xf32>,
    return
  }
  func.func @transform_0(%arg0: i32) -> (i32, i32, i32) {
    %c0_i32 = arith.constant 0 : i32
    %c0_i32_0 = arith.constant 0 : i32
    %c0_i32_1 = arith.constant 0 : i32
    return %arg0, %c0_i32, %c0_i32_0 : i32, i32, i32
  }
  func.func @transform_1(%arg0: i32) -> (i32, i32, i32) {
    %c0_i32 = arith.constant 0 : i32
    %c0_i32_0 = arith.constant 0 : i32
    %c0_i32_1 = arith.constant 0 : i32
    return %arg0, %c0_i32, %c0_i32_0 : i32, i32, i32
  }
  func.func @transform_2(%arg0: i32) -> (i32, i32) {
    %c0_i32 = arith.constant 0 : i32
    %c0_i32_0 = arith.constant 0 : i32
    return %arg0, %c0_i32 : i32, i32
  }
}

</mosaic_0001>

<llo_original>
// kernel: combined_loss.1
$region0: #{combined_loss.1}
  #allocation0 [shape = 'u32[]', space=smem, size = 0x4, offset = 0x4, fixed_abs, tag = 'smem constant byte address 0x4 - core index']
  #allocation1 [shape = 'u32[72,128]{1,0:T(1,128)}', space=vmem, size = 0x9000, scoped, tag = 'internal scratch']
  %s0 = inlined_call_operand.hbm [shape: f32[8,16,16], index: 0, kind: input, shape index: {}]
  %s1 = inlined_call_operand.hbm [shape: f32[8,16,16], index: 1, kind: input, shape index: {}]
  %s2 = inlined_call_operand.vmem [shape: f32[1,128], index: 2, kind: output, shape index: {}]
  %s3 = sld [smem:[#allocation0]]
  $region26: #{combined_loss.1} parent=0
    _
  %s5 = ssub.s32 1, %s3
  %s6 = scalar_select 0, %s5, %s3
  $region1: #{combined_loss.1} parent=0
    #allocation2 [shape = 'u8[65536]{0}', space=vmem, size = 0x10000, scoped, tag = 'input window, operand 0, single buffered']
    #allocation3 [shape = 's32[1]{0}', space=sflag, size = 0x4, scoped, tag = 'scoped memory for combined_loss.1']
    #allocation4 [shape = 'u8[65536]{0}', space=vmem, size = 0x10000, scoped, tag = 'input window, operand 1, single buffered']
    #allocation5 [shape = 's32[1]{0}', space=sflag, size = 0x4, scoped, tag = 'scoped memory for combined_loss.1']
    %7 = vsyncpa [#allocation3], 0
    %8 = vsyncpa [#allocation5], 0
    // Predicated region
    $region2: #{combined_loss.1} parent=1 // pred_check
      _
    $region3: #{combined_loss.1} parent=1 // pred_check_branch
      %10 = sbr.rel (0) target = $region5
    $region4: #{combined_loss.1} parent=1 // pred_region
      %12 = vsyncadd [#allocation3], 0
      %s13 = sshll.u32 %s0, 4
      %s14 = int_to_ptr.hbm [resolvable:$true] %s13
      %s15 = sshll.u32 [#allocation2], 4
      %s16 = int_to_ptr.vmem [resolvable:$true] %s15
      %21 = dma.hbm_to_vmem [thread:$0]  %s14, 2048, %s16, [#allocation3], 128, 128, 8
    $region5: #{combined_loss.1} parent=1 // pred_fallthru
      _
    // Predicated region
    $region6: #{combined_loss.1} parent=1 // pred_check
      _
    $region7: #{combined_loss.1} parent=1 // pred_check_branch
      %23 = sbr.rel (0) target = $region9
    $region8: #{combined_loss.1} parent=1 // pred_region
      %25 = vsyncadd [#allocation5], 0
      %s26 = sshll.u32 %s1, 4
      %s27 = int_to_ptr.hbm [resolvable:$true] %s26
      %s28 = sshll.u32 [#allocation4], 4
      %s29 = int_to_ptr.vmem [resolvable:$true] %s28
      %34 = dma.hbm_to_vmem [thread:$0]  %s27, 2048, %s29, [#allocation5], 128, 128, 8
    $region9: #{combined_loss.1} parent=1 // pred_fallthru
      _
    // Predicated region
    $region10: #{combined_loss.1} parent=1 // pred_check
      _
    $region11: #{combined_loss.1} parent=1 // pred_check_branch
      %36 = sbr.rel (0) target = $region13
    $region12: #{combined_loss.1} parent=1 // pred_region
      %38 = dma.done [#allocation3], 2048
    $region13: #{combined_loss.1} parent=1 // pred_fallthru
      _
    // Predicated region
    $region14: #{combined_loss.1} parent=1 // pred_check
      _
    $region15: #{combined_loss.1} parent=1 // pred_check_branch
      %40 = sbr.rel (0) target = $region17
    $region16: #{combined_loss.1} parent=1 // pred_region
      %42 = dma.done [#allocation5], 2048
    $region17: #{combined_loss.1} parent=1 // pred_fallthru
      _
    %v43 = vld [vmem:[#allocation2] sm:$0xff]
    %v44 = vld [vmem:[#allocation2 + $0x8] sm:$0xff]
    %v45 = vld [vmem:[#allocation2 + $0x10] sm:$0xff]
    %v46 = vld [vmem:[#allocation2 + $0x18] sm:$0xff]
    %v47 = vld [vmem:[#allocation2 + $0x20] sm:$0xff]
    %v48 = vld [vmem:[#allocation2 + $0x28] sm:$0xff]
    %v49 = vld [vmem:[#allocation2 + $0x30] sm:$0xff]
    %v50 = vld [vmem:[#allocation2 + $0x38] sm:$0xff]
    %v51 = vld [vmem:[#allocation2 + $0x40] sm:$0xff]
    %v52 = vld [vmem:[#allocation2 + $0x48] sm:$0xff]
    %v53 = vld [vmem:[#allocation2 + $0x50] sm:$0xff]
    %v54 = vld [vmem:[#allocation2 + $0x58] sm:$0xff]
    %v55 = vld [vmem:[#allocation2 + $0x60] sm:$0xff]
    %v56 = vld [vmem:[#allocation2 + $0x68] sm:$0xff]
    %v57 = vld [vmem:[#allocation2 + $0x70] sm:$0xff]
    %v58 = vld [vmem:[#allocation2 + $0x78] sm:$0xff]
    %v59 = vld [vmem:[#allocation4] sm:$0xff]
    %v60 = vld [vmem:[#allocation4 + $0x8] sm:$0xff]
    %v61 = vld [vmem:[#allocation4 + $0x10] sm:$0xff]
    %v62 = vld [vmem:[#allocation4 + $0x18] sm:$0xff]
    %v63 = vld [vmem:[#allocation4 + $0x20] sm:$0xff]
    %v64 = vld [vmem:[#allocation4 + $0x28] sm:$0xff]
    %v65 = vld [vmem:[#allocation4 + $0x30] sm:$0xff]
    %v66 = vld [vmem:[#allocation4 + $0x38] sm:$0xff]
    %v67 = vld [vmem:[#allocation4 + $0x40] sm:$0xff]
    %v68 = vld [vmem:[#allocation4 + $0x48] sm:$0xff]
    %v69 = vld [vmem:[#allocation4 + $0x50] sm:$0xff]
    %v70 = vld [vmem:[#allocation4 + $0x58] sm:$0xff]
    %v71 = vld [vmem:[#allocation4 + $0x60] sm:$0xff]
    %v72 = vld [vmem:[#allocation4 + $0x68] sm:$0xff]
    %v73 = vld [vmem:[#allocation4 + $0x70] sm:$0xff]
    %v74 = vld [vmem:[#allocation4 + $0x78] sm:$0xff]
    %v75 = vsub.f32 %v43, %v59
    %v76 = vsub.f32 %v44, %v60
    %v77 = vsub.f32 %v45, %v61
    %v78 = vsub.f32 %v46, %v62
    %v79 = vsub.f32 %v47, %v63
    %v80 = vsub.f32 %v48, %v64
    %v81 = vsub.f32 %v49, %v65
    %v82 = vsub.f32 %v50, %v66
    %v83 = vsub.f32 %v51, %v67
    %v84 = vsub.f32 %v52, %v68
    %v85 = vsub.f32 %v53, %v69
    %v86 = vsub.f32 %v54, %v70
    %v87 = vsub.f32 %v55, %v71
    %v88 = vsub.f32 %v56, %v72
    %v89 = vsub.f32 %v57, %v73
    %v90 = vsub.f32 %v58, %v74
    %v91 = vmul.f32 %v75, %v75
    %v92 = vmul.f32 %v76, %v76
    %v93 = vmul.f32 %v77, %v77
    %v94 = vmul.f32 %v78, %v78
    %v95 = vmul.f32 %v79, %v79
    %v96 = vmul.f32 %v80, %v80
    %v97 = vmul.f32 %v81, %v81
    %v98 = vmul.f32 %v82, %v82
    %v99 = vmul.f32 %v83, %v83
    %v100 = vmul.f32 %v84, %v84
    %v101 = vmul.f32 %v85, %v85
    %v102 = vmul.f32 %v86, %v86
    %v103 = vmul.f32 %v87, %v87
    %v104 = vmul.f32 %v88, %v88
    %v105 = vmul.f32 %v89, %v89
    %v106 = vmul.f32 %v90, %v90
    %vm107 = vcmask 130048
    %v108 = vsel %vm107, %v91, 0.0
    %v109 = vsel %vm107, %v92, 0.0
    %v110 = vadd.f32 %v108, %v109
    %v111 = vsel %vm107, %v93, 0.0
    %v112 = vadd.f32 %v110, %v111
    %v113 = vsel %vm107, %v94, 0.0
    %v114 = vadd.f32 %v112, %v113
    %v115 = vsel %vm107, %v95, 0.0
    %v116 = vadd.f32 %v114, %v115
    %v117 = vsel %vm107, %v96, 0.0
    %v118 = vadd.f32 %v116, %v117
    %v119 = vsel %vm107, %v97, 0.0
    %v120 = vadd.f32 %v118, %v119
    %v121 = vsel %vm107, %v98, 0.0
    %v122 = vadd.f32 %v120, %v121
    %v123 = vsel %vm107, %v99, 0.0
    %v124 = vadd.f32 %v122, %v123
    %v125 = vsel %vm107, %v100, 0.0
    %v126 = vadd.f32 %v124, %v125
    %v127 = vsel %vm107, %v101, 0.0
    %v128 = vadd.f32 %v126, %v127
    %v129 = vsel %vm107, %v102, 0.0
    %v130 = vadd.f32 %v128, %v129
    %v131 = vsel %vm107, %v103, 0.0
    %v132 = vadd.f32 %v130, %v131
    %v133 = vsel %vm107, %v104, 0.0
    %v134 = vadd.f32 %v132, %v133
    %v135 = vsel %vm107, %v105, 0.0
    %v136 = vadd.f32 %v134, %v135
    %v137 = vsel %vm107, %v106, 0.0
    %v138 = vadd.f32 %v136, %v137
    %139 = vadd.xlane.f32.xlu0 %v138
    %v140 = vpop.xlane.xlu0 %139
    %v141 = vrot.slane %v140, 4
    %v142 = vadd.f32 %v140, %v141
    %v143 = vrot.slane %v142, 2
    %v144 = vadd.f32 %v142, %v143
    %v145 = vrot.slane %v144, 1
    %v146 = vadd.f32 %v144, %v145
    %s147 = vtos %v146
    %v148 = vrot.slane %v43, 7
    %v149 = vrot.slane %v45, 7
    %v150 = vrot.slane %v47, 7
    %v151 = vrot.slane %v49, 7
    %v152 = vrot.slane %v51, 7
    %v153 = vrot.slane %v53, 7
    %v154 = vrot.slane %v55, 7
    %v155 = vrot.slane %v57, 7
    %v156 = vrot.slane %v44, 7
    %v157 = vrot.slane %v46, 7
    %v158 = vrot.slane %v48, 7
    %v159 = vrot.slane %v50, 7
    %v160 = vrot.slane %v52, 7
    %v161 = vrot.slane %v54, 7
    %v162 = vrot.slane %v56, 7
    %v163 = vrot.slane %v58, 7
    %v164 = vlaneseq
    %v165 = vshrl.u32 %v164, 7
    %vm166 = vcmp.lt.s32.totalorder %v165, 1
    %v167 = vsel %vm166, %v148, %v156
    %v168 = vsel %vm166, %v149, %v157
    %v169 = vsel %vm166, %v150, %v158
    %v170 = vsel %vm166, %v151, %v159
    %v171 = vsel %vm166, %v152, %v160
    %v172 = vsel %vm166, %v153, %v161
    %v173 = vsel %vm166, %v154, %v162
    %v174 = vsel %vm166, %v155, %v163
    %v175 = vsel %vm166, %v156, %v148
    %v176 = vsel %vm166, %v157, %v149
    %v177 = vsel %vm166, %v158, %v150
    %v178 = vsel %vm166, %v159, %v151
    %v179 = vsel %vm166, %v160, %v152
    %v180 = vsel %vm166, %v161, %v153
    %v181 = vsel %vm166, %v162, %v154
    %v182 = vsel %vm166, %v163, %v155
    %v183 = vadd.s32 %v165, 8
    %vm184 = vcmp.gt.s32.totalorder %v165, 0
    %vm185 = vcmp.gt.s32.totalorder %v183, 0
    %v186 = vsub.f32 %v43, %v175
    %v187 = vsub.f32 %v44, %v167
    %v188 = vsub.f32 %v45, %v176
    %v189 = vsub.f32 %v46, %v168
    %v190 = vsub.f32 %v47, %v177
    %v191 = vsub.f32 %v48, %v169
    %v192 = vsub.f32 %v49, %v178
    %v193 = vsub.f32 %v50, %v170
    %v194 = vsub.f32 %v51, %v179
    %v195 = vsub.f32 %v52, %v171
    %v196 = vsub.f32 %v53, %v180
    %v197 = vsub.f32 %v54, %v172
    %v198 = vsub.f32 %v55, %v181
    %v199 = vsub.f32 %v56, %v173
    %v200 = vsub.f32 %v57, %v182
    %v201 = vsub.f32 %v58, %v174
    %v202 = vand.u32 2147483647, %v186
    %v203 = vand.u32 2147483647, %v187
    %v204 = vand.u32 2147483647, %v188
    %v205 = vand.u32 2147483647, %v189
    %v206 = vand.u32 2147483647, %v190
    %v207 = vand.u32 2147483647, %v191
    %v208 = vand.u32 2147483647, %v192
    %v209 = vand.u32 2147483647, %v193
    %v210 = vand.u32 2147483647, %v194
    %v211 = vand.u32 2147483647, %v195
    %v212 = vand.u32 2147483647, %v196
    %v213 = vand.u32 2147483647, %v197
    %v214 = vand.u32 2147483647, %v198
    %v215 = vand.u32 2147483647, %v199
    %v216 = vand.u32 2147483647, %v200
    %v217 = vand.u32 2147483647, %v201
    %v218 = vsel %vm184, %v202, 0.0
    %v219 = vsel %vm185, %v203, 0.0
    %v220 = vsel %vm184, %v204, 0.0
    %v221 = vsel %vm185, %v205, 0.0
    %v222 = vsel %vm184, %v206, 0.0
    %v223 = vsel %vm185, %v207, 0.0
    %v224 = vsel %vm184, %v208, 0.0
    %v225 = vsel %vm185, %v209, 0.0
    %v226 = vsel %vm184, %v210, 0.0
    %v227 = vsel %vm185, %v211, 0.0
    %v228 = vsel %vm184, %v212, 0.0
    %v229 = vsel %vm185, %v213, 0.0
    %v230 = vsel %vm184, %v214, 0.0
    %v231 = vsel %vm185, %v215, 0.0
    %v232 = vsel %vm184, %v216, 0.0
    %v233 = vsel %vm185, %v217, 0.0
    %v234 = vsel %vm107, %v218, 0.0
    %v235 = vsel %vm107, %v219, 0.0
    %v236 = vadd.f32 %v234, %v235
    %v237 = vsel %vm107, %v220, 0.0
    %v238 = vadd.f32 %v236, %v237
    %v239 = vsel %vm107, %v221, 0.0
    %v240 = vadd.f32 %v238, %v239
    %v241 = vsel %vm107, %v222, 0.0
    %v242 = vadd.f32 %v240, %v241
    %v243 = vsel %vm107, %v223, 0.0
    %v244 = vadd.f32 %v242, %v243
    %v245 = vsel %vm107, %v224, 0.0
    %v246 = vadd.f32 %v244, %v245
    %v247 = vsel %vm107, %v225, 0.0
    %v248 = vadd.f32 %v246, %v247
    %v249 = vsel %vm107, %v226, 0.0
    %v250 = vadd.f32 %v248, %v249
    %v251 = vsel %vm107, %v227, 0.0
    %v252 = vadd.f32 %v250, %v251
    %v253 = vsel %vm107, %v228, 0.0
    %v254 = vadd.f32 %v252, %v253
    %v255 = vsel %vm107, %v229, 0.0
    %v256 = vadd.f32 %v254, %v255
    %v257 = vsel %vm107, %v230, 0.0
    %v258 = vadd.f32 %v256, %v257
    %v259 = vsel %vm107, %v231, 0.0
    %v260 = vadd.f32 %v258, %v259
    %v261 = vsel %vm107, %v232, 0.0
    %v262 = vadd.f32 %v260, %v261
    %v263 = vsel %vm107, %v233, 0.0
    %v264 = vadd.f32 %v262, %v263
    %265 = vadd.xlane.f32.xlu0 %v264
    %v266 = vpop.xlane.xlu0 %265
    %v267 = vrot.slane %v266, 4
    %v268 = vadd.f32 %v266, %v267
    %v269 = vrot.slane %v268, 2
    %v270 = vadd.f32 %v268, %v269
    %v271 = vrot.slane %v270, 1
    %v272 = vadd.f32 %v270, %v271
    %s273 = vtos %v272
    %vm274 = vcmask 1047680
    %275 = vrot.lane.b32.xlu0 %v43, 16
    %v276 = vpop.permute.xlu0 %275
    %v277 = vsel %vm274, %v276, %v43
    %278 = vrot.lane.b32.xlu0 %v44, 16
    %v279 = vpop.permute.xlu0 %278
    %v280 = vsel %vm274, %v279, %v44
    %281 = vrot.lane.b32.xlu0 %v45, 16
    %v282 = vpop.permute.xlu0 %281
    %v283 = vsel %vm274, %v282, %v45
    %284 = vrot.lane.b32.xlu0 %v46, 16
    %v285 = vpop.permute.xlu0 %284
    %v286 = vsel %vm274, %v285, %v46
    %287 = vrot.lane.b32.xlu0 %v47, 16
    %v288 = vpop.permute.xlu0 %287
    %v289 = vsel %vm274, %v288, %v47
    %290 = vrot.lane.b32.xlu0 %v48, 16
    %v291 = vpop.permute.xlu0 %290
    %v292 = vsel %vm274, %v291, %v48
    %293 = vrot.lane.b32.xlu0 %v49, 16
    %v294 = vpop.permute.xlu0 %293
    %v295 = vsel %vm274, %v294, %v49
    %296 = vrot.lane.b32.xlu0 %v50, 16
    %v297 = vpop.permute.xlu0 %296
    %v298 = vsel %vm274, %v297, %v50
    %299 = vrot.lane.b32.xlu0 %v51, 16
    %v300 = vpop.permute.xlu0 %299
    %v301 = vsel %vm274, %v300, %v51
    %302 = vrot.lane.b32.xlu0 %v52, 16
    %v303 = vpop.permute.xlu0 %302
    %v304 = vsel %vm274, %v303, %v52
    %305 = vrot.lane.b32.xlu0 %v53, 16
    %v306 = vpop.permute.xlu0 %305
    %v307 = vsel %vm274, %v306, %v53
    %308 = vrot.lane.b32.xlu0 %v54, 16
    %v309 = vpop.permute.xlu0 %308
    %v310 = vsel %vm274, %v309, %v54
    %311 = vrot.lane.b32.xlu0 %v55, 16
    %v312 = vpop.permute.xlu0 %311
    %v313 = vsel %vm274, %v312, %v55
    %314 = vrot.lane.b32.xlu0 %v56, 16
    %v315 = vpop.permute.xlu0 %314
    %v316 = vsel %vm274, %v315, %v56
    %317 = vrot.lane.b32.xlu0 %v57, 16
    %v318 = vpop.permute.xlu0 %317
    %v319 = vsel %vm274, %v318, %v57
    %320 = vrot.lane.b32.xlu0 %v58, 16
    %v321 = vpop.permute.xlu0 %320
    %v322 = vsel %vm274, %v321, %v58
    %323 = vrot.lane.b32.xlu0 %v277, 16
    %v324 = vpop.permute.xlu0 %323
    %325 = vrot.lane.b32.xlu0 %v280, 16
    %v326 = vpop.permute.xlu0 %325
    %327 = vrot.lane.b32.xlu0 %v283, 16
    %v328 = vpop.permute.xlu0 %327
    %329 = vrot.lane.b32.xlu0 %v286, 16
    %v330 = vpop.permute.xlu0 %329
    %331 = vrot.lane.b32.xlu0 %v289, 16
    %v332 = vpop.permute.xlu0 %331
    %333 = vrot.lane.b32.xlu0 %v292, 16
    %v334 = vpop.permute.xlu0 %333
    %335 = vrot.lane.b32.xlu0 %v295, 16
    %v336 = vpop.permute.xlu0 %335
    %337 = vrot.lane.b32.xlu0 %v298, 16
    %v338 = vpop.permute.xlu0 %337
    %339 = vrot.lane.b32.xlu0 %v301, 16
    %v340 = vpop.permute.xlu0 %339
    %341 = vrot.lane.b32.xlu0 %v304, 16
    %v342 = vpop.permute.xlu0 %341
    %343 = vrot.lane.b32.xlu0 %v307, 16
    %v344 = vpop.permute.xlu0 %343
    %345 = vrot.lane.b32.xlu0 %v310, 16
    %v346 = vpop.permute.xlu0 %345
    %347 = vrot.lane.b32.xlu0 %v313, 16
    %v348 = vpop.permute.xlu0 %347
    %349 = vrot.lane.b32.xlu0 %v316, 16
    %v350 = vpop.permute.xlu0 %349
    %351 = vrot.lane.b32.xlu0 %v319, 16
    %v352 = vpop.permute.xlu0 %351
    %353 = vrot.lane.b32.xlu0 %v322, 16
    %v354 = vpop.permute.xlu0 %353
    %v355 = vsel %vm274, %v324, %v43
    %v356 = vsel %vm274, %v326, %v44
    %v357 = vsel %vm274, %v328, %v45
    %v358 = vsel %vm274, %v330, %v46
    %v359 = vsel %vm274, %v332, %v47
    %v360 = vsel %vm274, %v334, %v48
    %v361 = vsel %vm274, %v336, %v49
    %v362 = vsel %vm274, %v338, %v50
    %v363 = vsel %vm274, %v340, %v51
    %v364 = vsel %vm274, %v342, %v52
    %v365 = vsel %vm274, %v344, %v53
    %v366 = vsel %vm274, %v346, %v54
    %v367 = vsel %vm274, %v348, %v55
    %v368 = vsel %vm274, %v350, %v56
    %v369 = vsel %vm274, %v352, %v57
    %v370 = vsel %vm274, %v354, %v58
    %v371 = vlaneseq
    %v372 = vand.u32 %v371, 127
    %vm373 = vcmp.gt.s32.totalorder %v372, 0
    %390 = vrot.lane.b32.xlu0 %v355, 113
    %v391 = vpop.permute.xlu0 %390
    %392 = vrot.lane.b32.xlu0 %v356, 113
    %v393 = vpop.permute.xlu0 %392
    %394 = vrot.lane.b32.xlu0 %v357, 113
    %v395 = vpop.permute.xlu0 %394
    %396 = vrot.lane.b32.xlu0 %v358, 113
    %v397 = vpop.permute.xlu0 %396
    %398 = vrot.lane.b32.xlu0 %v359, 113
    %v399 = vpop.permute.xlu0 %398
    %400 = vrot.lane.b32.xlu0 %v360, 113
    %v401 = vpop.permute.xlu0 %400
    %402 = vrot.lane.b32.xlu0 %v361, 113
    %v403 = vpop.permute.xlu0 %402
    %404 = vrot.lane.b32.xlu0 %v362, 113
    %v405 = vpop.permute.xlu0 %404
    %406 = vrot.lane.b32.xlu0 %v363, 113
    %v407 = vpop.permute.xlu0 %406
    %408 = vrot.lane.b32.xlu0 %v364, 113
    %v409 = vpop.permute.xlu0 %408
    %410 = vrot.lane.b32.xlu0 %v365, 113
    %v411 = vpop.permute.xlu0 %410
    %412 = vrot.lane.b32.xlu0 %v366, 113
    %v413 = vpop.permute.xlu0 %412
    %414 = vrot.lane.b32.xlu0 %v367, 113
    %v415 = vpop.permute.xlu0 %414
    %416 = vrot.lane.b32.xlu0 %v368, 113
    %v417 = vpop.permute.xlu0 %416
    %418 = vrot.lane.b32.xlu0 %v369, 113
    %v419 = vpop.permute.xlu0 %418
    %420 = vrot.lane.b32.xlu0 %v370, 113
    %v421 = vpop.permute.xlu0 %420
    %v438 = vsub.f32 %v43, %v391
    %v439 = vsub.f32 %v44, %v393
    %v440 = vsub.f32 %v45, %v395
    %v441 = vsub.f32 %v46, %v397
    %v442 = vsub.f32 %v47, %v399
    %v443 = vsub.f32 %v48, %v401
    %v444 = vsub.f32 %v49, %v403
    %v445 = vsub.f32 %v50, %v405
    %v446 = vsub.f32 %v51, %v407
    %v447 = vsub.f32 %v52, %v409
    %v448 = vsub.f32 %v53, %v411
    %v449 = vsub.f32 %v54, %v413
    %v450 = vsub.f32 %v55, %v415
    %v451 = vsub.f32 %v56, %v417
    %v452 = vsub.f32 %v57, %v419
    %v453 = vsub.f32 %v58, %v421
    %v454 = vand.u32 2147483647, %v438
    %v455 = vand.u32 2147483647, %v439
    %v456 = vand.u32 2147483647, %v440
    %v457 = vand.u32 2147483647, %v441
    %v458 = vand.u32 2147483647, %v442
    %v459 = vand.u32 2147483647, %v443
    %v460 = vand.u32 2147483647, %v444
    %v461 = vand.u32 2147483647, %v445
    %v462 = vand.u32 2147483647, %v446
    %v463 = vand.u32 2147483647, %v447
    %v464 = vand.u32 2147483647, %v448
    %v465 = vand.u32 2147483647, %v449
    %v466 = vand.u32 2147483647, %v450
    %v467 = vand.u32 2147483647, %v451
    %v468 = vand.u32 2147483647, %v452
    %v469 = vand.u32 2147483647, %v453
    %v470 = vsel %vm373, %v454, 0.0
    %v471 = vsel %vm373, %v455, 0.0
    %v472 = vsel %vm373, %v456, 0.0
    %v473 = vsel %vm373, %v457, 0.0
    %v474 = vsel %vm373, %v458, 0.0
    %v475 = vsel %vm373, %v459, 0.0
    %v476 = vsel %vm373, %v460, 0.0
    %v477 = vsel %vm373, %v461, 0.0
    %v478 = vsel %vm373, %v462, 0.0
    %v479 = vsel %vm373, %v463, 0.0
    %v480 = vsel %vm373, %v464, 0.0
    %v481 = vsel %vm373, %v465, 0.0
    %v482 = vsel %vm373, %v466, 0.0
    %v483 = vsel %vm373, %v467, 0.0
    %v484 = vsel %vm373, %v468, 0.0
    %v485 = vsel %vm373, %v469, 0.0
    %v486 = vsel %vm107, %v470, 0.0
    %v487 = vsel %vm107, %v471, 0.0
    %v488 = vadd.f32 %v486, %v487
    %v489 = vsel %vm107, %v472, 0.0
    %v490 = vadd.f32 %v488, %v489
    %v491 = vsel %vm107, %v473, 0.0
    %v492 = vadd.f32 %v490, %v491
    %v493 = vsel %vm107, %v474, 0.0
    %v494 = vadd.f32 %v492, %v493
    %v495 = vsel %vm107, %v475, 0.0
    %v496 = vadd.f32 %v494, %v495
    %v497 = vsel %vm107, %v476, 0.0
    %v498 = vadd.f32 %v496, %v497
    %v499 = vsel %vm107, %v477, 0.0
    %v500 = vadd.f32 %v498, %v499
    %v501 = vsel %vm107, %v478, 0.0
    %v502 = vadd.f32 %v500, %v501
    %v503 = vsel %vm107, %v479, 0.0
    %v504 = vadd.f32 %v502, %v503
    %v505 = vsel %vm107, %v480, 0.0
    %v506 = vadd.f32 %v504, %v505
    %v507 = vsel %vm107, %v481, 0.0
    %v508 = vadd.f32 %v506, %v507
    %v509 = vsel %vm107, %v482, 0.0
    %v510 = vadd.f32 %v508, %v509
    %v511 = vsel %vm107, %v483, 0.0
    %v512 = vadd.f32 %v510, %v511
    %v513 = vsel %vm107, %v484, 0.0
    %v514 = vadd.f32 %v512, %v513
    %v515 = vsel %vm107, %v485, 0.0
    %v516 = vadd.f32 %v514, %v515
    %517 = vadd.xlane.f32.xlu0 %v516
    %v518 = vpop.xlane.xlu0 %517
    %v519 = vrot.slane %v518, 4
    %v520 = vadd.f32 %v518, %v519
    %v521 = vrot.slane %v520, 2
    %v522 = vadd.f32 %v520, %v521
    %v523 = vrot.slane %v522, 1
    %v524 = vadd.f32 %v522, %v523
    %s525 = vtos %v524
    %vm526 = vcmp.eq.s32.totalorder %v372, 0
    %vm527 = vcmp.eq.s32.totalorder %v372, 1
    %vm528 = vcmp.eq.s32.totalorder %v372, 2
    %v529 = vstv %s525
    %v530 = vsel %vm528, %v529, 0.0
    %v531 = vstv %s273
    %v532 = vsel %vm527, %v531, %v530
    %v533 = vstv %s147
    %v534 = vsel %vm526, %v533, %v532
    %535 = vst [vmem:[%s2] sm:$0x1] %v534
    // Predicated region
    $region18: #{combined_loss.1} parent=1 // pred_check
      _
    $region19: #{combined_loss.1} parent=1 // pred_check_branch
      %537 = sbr.rel (0) target = $region21
    $region20: #{combined_loss.1} parent=1 // pred_region
      _
    $region21: #{combined_loss.1} parent=1 // pred_fallthru
      _
    // Predicated region
    $region22: #{combined_loss.1} parent=1 // pred_check
      _
    $region23: #{combined_loss.1} parent=1 // pred_check_branch
      %539 = sbr.rel (0) target = $region25
    $region24: #{combined_loss.1} parent=1 // pred_region
      _
    $region25: #{combined_loss.1} parent=1 // pred_fallthru
      _
    %540 = vsyncpa [#allocation3], 1
    %541 = vsyncpa [#allocation5], 1

</llo_original>
